<compile_context>
chip_gen: v5e
topology: v5e:2x2
jax: 0.10.0
libtpu: 0.0.40
codegen_flags: <defaults>
</compile_context>

<pallas_src>
import functools

import jax
import jax.numpy as jnp
import numpy as np
from jax import lax
from jax.experimental import pallas as pl
from jax.experimental.pallas import tpu as pltpu

SCALE = 0.7071067811865476  # sqrt(0.5), matches torch.sqrt(FloatTensor([0.5]))


def cnn_encoder_kernel(emb_ref, w_e2h_ref, b_e2h_ref, wc_ref, bc_ref,
                       w_h2e_ref, b_h2e_ref, conved_ref, combined_ref,
                       h_ref, mask_ref, *, seq_len, kernel_size, accum_path):
    """Grid = (batch_tiles, n_layers); layer axis innermost ("arbitrary").

    emb_ref      : (Bt*L, E)       f32   token+pos embedding (batch*seq fused rows)
    w_e2h_ref    : (E, H)          bf16
    b_e2h_ref    : (1, H)          f32
    wc_ref       : (1, K*H, 2H)    bf16  this layer's conv weight  (concat path)
                   (1, K, H, 2H)   bf16                            (accum path)
    bc_ref       : (1, 1, 2H)      f32
    w_h2e_ref    : (H, E)          bf16
    b_h2e_ref    : (1, E)          f32
    conved_ref   : (Bt*L, E)       f32   output 1 (written on the last layer step)
    combined_ref : (Bt*L, E)       f32   output 2 (written on the last layer step)
    h_ref        : (Bt*L, H)       f32   VMEM scratch: residual stream carried
                                          across the layer grid axis
    mask_ref     : (max(K-1,1), Bt*L, H) bf16 VMEM scratch: hoisted per-tap
                                          boundary masks (built at layer 0)
    """
    layer = pl.program_id(1)
    n_layers = pl.num_programs(1)
    rows, hid = h_ref.shape
    L = seq_len
    Bt = rows // L
    K = kernel_size
    pad = (K - 1) // 2

    # ---- first layer step of each batch tile: init residual stream + masks ----
    @pl.when(layer == 0)
    def _():
        h_ref[...] = (
            jnp.dot(emb_ref[...].astype(jnp.bfloat16), w_e2h_ref[...],
                    preferred_element_type=jnp.float32)
            + b_e2h_ref[...])
        # Per-tap boundary masks: 1.0 where a circularly rolled row stays inside
        # its own sequence (== conv zero padding).  Built once per batch tile
        # (NOT only at program_id(0)==0 so it stays correct under megacore
        # sharding of the parallel batch axis) and reused by every layer.
        if K > 1:
            i_local = lax.broadcasted_iota(
                jnp.int32, (Bt, L, hid), 1).reshape(rows, hid)
            for j in range(K):
                d = j - pad                      # tap offset in [-pad, pad]
                if d == 0:
                    continue
                m = j if j < pad else j - 1
                valid = jnp.logical_and(i_local + d >= 0, i_local + d < L)
                mask_ref[m, ...] = valid.astype(jnp.bfloat16)

    h = h_ref[...]                                     # (rows, H) f32
    h_bf = h.astype(jnp.bfloat16)

    def make_tap(j):
        """j-th shifted view of h as a masked bf16 (rows, H) tile."""
        d = j - pad
        if d == 0:
            return h_bf
        m = j if j < pad else j - 1
        # shifted[r] = h[(r + d) mod rows]; wrapped / cross-sequence rows are
        # zeroed by the hoisted mask (one bf16 multiply per tap).
        shifted = pltpu.roll(h, shift=(-d) % rows, axis=0)
        return shifted.astype(jnp.bfloat16) * mask_ref[m]

    # ---- conv layer: im2col via XLU roll + hoisted masks, MXU matmul(s) ----
    if accum_path:
        # Big-H path: K accumulated matmuls, no (rows, K*H) slab materialized.
        acc = jnp.dot(h_bf, wc_ref[0, pad],
                      preferred_element_type=jnp.float32)
        for j in range(K):
            if j == pad:
                continue
            acc = acc + jnp.dot(make_tap(j), wc_ref[0, j],
                                preferred_element_type=jnp.float32)
        acc = acc + bc_ref[0]                          # (rows, 2H) f32
    else:
        # Small-H path: concat bf16 taps on the lane axis -> one big matmul so
        # the contraction dim (K*H) keeps the MXU filled.
        x_cat = jnp.concatenate([make_tap(j) for j in range(K)], axis=-1)
        acc = (jnp.dot(x_cat, wc_ref[0], preferred_element_type=jnp.float32)
               + bc_ref[0])                            # (rows, 2H) f32

    # GLU over the channel dim; sigmoid kept on the EUP (exp + approx recip).
    gate = acc[:, hid:]
    sig = pl.reciprocal(1.0 + jnp.exp(-gate), approx=True)
    h_new = (acc[:, :hid] * sig + h) * SCALE           # GLU + residual + scale
    h_ref[...] = h_new

    # ---- last layer step: hid2emb linear + residual with the f32 embedding ----
    @pl.when(layer == n_layers - 1)
    def _():
        conved = (jnp.dot(h_new.astype(jnp.bfloat16), w_h2e_ref[...],
                          preferred_element_type=jnp.float32)
                  + b_h2e_ref[...])                    # (rows, E) f32
        conved_ref[...] = conved
        combined_ref[...] = (conved + emb_ref[...]) * SCALE


def make_params(key, input_dim, emb_dim, hid_dim, n_layers, kernel_size,
                max_length):
    assert kernel_size % 2 == 1, "conv-seq2seq requires an odd kernel_size"
    ks = jax.random.split(key, 7)
    p = {}
    p['tok_embedding'] = 0.1 * jax.random.normal(
        ks[0], (input_dim, emb_dim), jnp.float32)
    p['pos_embedding'] = 0.1 * jax.random.normal(
        ks[1], (max_length, emb_dim), jnp.float32)
    # Linear layers stored directly in (in, out) matmul form.
    p['w_e2h'] = 0.1 * jax.random.normal(ks[2], (emb_dim, hid_dim), jnp.float32)
    p['b_e2h'] = 0.1 * jax.random.normal(ks[3], (1, hid_dim), jnp.float32)
    # Conv1d weights: PyTorch shape is (2H, H, K); we store the transposed
    # tap-major matmul form (n_layers, K, H, 2H)  [wc[k, c, o] = w_torch[o, c, k]].
    p['wc'] = 0.1 * jax.random.normal(
        ks[4], (n_layers, kernel_size, hid_dim, 2 * hid_dim), jnp.float32)
    p['bc'] = 0.1 * jax.random.normal(
        ks[5], (n_layers, 1, 2 * hid_dim), jnp.float32)
    p['w_h2e'] = 0.1 * jax.random.normal(ks[6], (hid_dim, emb_dim), jnp.float32)
    p['b_h2e'] = jnp.zeros((1, emb_dim), jnp.float32)
    return p


def _device_budget():
    """(vmem_limit_bytes, max_rows, min_batch_grid) tuned per TPU generation."""
    vmem_cap = None
    try:
        info = pltpu.get_tpu_info()
        vmem_cap = getattr(info, "vmem_capacity_bytes", None)
    except Exception:
        vmem_cap = None
    if not vmem_cap:
        vmem_cap = 64 * 1024 * 1024          # conservative: safe on v7x (64 MiB)
    if vmem_cap >= 100 * 1024 * 1024:        # v5e / v6e: 128 MiB VMEM, 1 TC
        return 96 * 1024 * 1024, 2048, 1
    # v7x-like: 64 MiB VMEM, 2 TCs -> keep >=2 batch tiles so both cores work.
    return 46 * 1024 * 1024, 1024, 2


def _pick_batch_tile(B, L, *, max_rows, min_grid=1):
    """Largest divisor Bt of B such that the fused (Bt*L, .) block is legal.

    Constraints: Bt*L <= max_rows; if Bt < B the block is a real tile so Bt*L
    must be a multiple of 8 (sublane rule); when min_grid > 1, prefer Bt with
    B//Bt a multiple of min_grid so the 'parallel' batch axis can shard across
    both v7x TensorCores.
    """
    divisors = [d for d in range(B, 0, -1) if B % d == 0]

    def legal(d, want_min_grid):
        rows = d * L
        if rows > max_rows:
            return False
        if d < B and rows % 8 != 0:
            return False
        if want_min_grid and (B // d) % min_grid != 0:
            return False
        return True

    for d in divisors:
        if legal(d, True):
            return d
    for d in divisors:
        if legal(d, False):
            return d
    return B   # whole-batch block is always a legal (full-array) BlockSpec


def cnn_encoder_forward(src, p, *, batch_tile=None, force_accum_path=None):
    """src: (B, L) int32 token ids. Returns (conved, combined, embedded)."""
    B, L = src.shape
    E = p['tok_embedding'].shape[1]
    H = p['w_e2h'].shape[1]
    n_layers, K = p['wc'].shape[0], p['wc'].shape[1]
    assert K % 2 == 1, "kernel_size must be odd"

    # Glue: embedding gathers + pos broadcast stay in plain JAX.
    tok = p['tok_embedding'][src]                      # (B, L, E)
    pos = p['pos_embedding'][jnp.arange(L)][None]      # (1, L, E)
    embedded = tok + pos                               # dropout == identity (eval)

    vmem_limit, max_rows, min_grid = _device_budget()
    if batch_tile is None:
        batch_tile = _pick_batch_tile(B, L, max_rows=max_rows, min_grid=min_grid)
    Bt = batch_tile
    assert B % Bt == 0, "batch_tile must divide the batch size"
    rows = Bt * L

    # bf16 matmul operands (MXU-native); biases and the embedding residual path
    # stay f32 (the bf16 cast of the embedding happens only for the MXU input).
    emb2d = embedded.reshape(B * L, E)                 # f32
    w_e2h = p['w_e2h'].astype(jnp.bfloat16)
    w_h2e = p['w_h2e'].astype(jnp.bfloat16)

    # Big H: K accumulated matmuls (no (rows, K*H) im2col slab); small H:
    # lane-concat im2col so the fused contraction dim fills the MXU.
    accum_path = (H >= 256) if force_accum_path is None else bool(force_accum_path)
    if accum_path:
        wc = p['wc'].astype(jnp.bfloat16)              # (n_layers, K, H, 2H)
        wc_spec = pl.BlockSpec((1, K, H, 2 * H), lambda b, l: (l, 0, 0, 0))
    else:
        wc = p['wc'].reshape(n_layers, K * H, 2 * H).astype(jnp.bfloat16)
        wc_spec = pl.BlockSpec((1, K * H, 2 * H), lambda b, l: (l, 0, 0))

    kernel = functools.partial(cnn_encoder_kernel, seq_len=L,
                               kernel_size=K, accum_path=accum_path)

    conved2d, combined2d = pl.pallas_call(
        kernel,
        out_shape=(jax.ShapeDtypeStruct((B * L, E), jnp.float32),
                   jax.ShapeDtypeStruct((B * L, E), jnp.float32)),
        grid=(B // Bt, n_layers),
        in_specs=[
            pl.BlockSpec((rows, E), lambda b, l: (b, 0)),        # embedding (f32)
            pl.BlockSpec((E, H), lambda b, l: (0, 0)),           # w_e2h (const)
            pl.BlockSpec((1, H), lambda b, l: (0, 0)),           # b_e2h (const)
            wc_spec,                                             # wc: per layer
            pl.BlockSpec((1, 1, 2 * H), lambda b, l: (l, 0, 0)), # bc: per layer
            pl.BlockSpec((H, E), lambda b, l: (0, 0)),           # w_h2e (const)
            pl.BlockSpec((1, E), lambda b, l: (0, 0)),           # b_h2e (const)
        ],
        out_specs=(pl.BlockSpec((rows, E), lambda b, l: (b, 0)),
                   pl.BlockSpec((rows, E), lambda b, l: (b, 0))),
        scratch_shapes=[
            pltpu.VMEM((rows, H), jnp.float32),                  # residual stream
            pltpu.VMEM((max(K - 1, 1), rows, H), jnp.bfloat16),  # hoisted masks
        ],
        compiler_params=pltpu.CompilerParams(
            dimension_semantics=("parallel", "arbitrary"),
            vmem_limit_bytes=vmem_limit),
    )(emb2d, w_e2h, p['b_e2h'], wc, p['bc'], w_h2e, p['b_h2e'])

    conved = conved2d.reshape(B, L, E)
    combined = combined2d.reshape(B, L, E)
    return conved, combined, embedded


def reference_forward(src, p):
    """Pure-JAX f32 reference matching the PyTorch forward (eval-mode dropout)."""
    B, L = src.shape
    tok = p['tok_embedding'][src]
    pos = p['pos_embedding'][jnp.arange(L)][None]
    embedded = tok + pos
    h = embedded @ p['w_e2h'] + p['b_e2h']              # (B, L, H)
    n_layers, K, H, H2 = p['wc'].shape
    pad = (K - 1) // 2
    for layer in range(n_layers):
        x_pad = jnp.pad(h, ((0, 0), (pad, pad), (0, 0)))
        acc = jnp.broadcast_to(p['bc'][layer], (B, L, H2))
        for j in range(K):
            acc = acc + x_pad[:, j:j + L, :] @ p['wc'][layer, j]
        glu = acc[..., :H] * jax.nn.sigmoid(acc[..., H:])
        h = (glu + h) * SCALE
    conved = h @ p['w_h2e'] + p['b_h2e']
    combined = (conved + embedded) * SCALE
    return conved, combined


if __name__ == "__main__":
    # Small, module-consistent shapes.
    B, L = 2, 8
    input_dim, emb_dim, hid_dim = 50, 32, 32
    n_layers, kernel_size, max_length = 2, 3, 20

    key = jax.random.PRNGKey(0)
    k_src, k_par = jax.random.split(key)
    src = jax.random.randint(k_src, (B, L), 0, input_dim, dtype=jnp.int32)
    params = make_params(k_par, input_dim, emb_dim, hid_dim,
                         n_layers, kernel_size, max_length)

    ref_conved, ref_combined = reference_forward(src, params)

    # Exercise both conv codegen paths (lane-concat im2col for small H and the
    # accumulated per-tap matmul path used when H >= 256) so every shipped
    # kernel path compiles, runs, and matches the f32 reference.
    for force in (None, True):
        conved, combined, _ = cnn_encoder_forward(src, params,
                                                  force_accum_path=force)
        conved = jax.block_until_ready(conved)
        combined = jax.block_until_ready(combined)
        # bf16 matmul operands vs. the f32 reference -> relaxed tolerance.
        np.testing.assert_allclose(np.asarray(conved), np.asarray(ref_conved),
                                   rtol=2e-2, atol=2e-2)
        np.testing.assert_allclose(np.asarray(combined),
                                   np.asarray(ref_combined),
                                   rtol=2e-2, atol=2e-2)

    print("KERNEL_OK")
</pallas_src>

<mosaic_0001>
module attributes {stable_mosaic.version = 11 : i64} {
  func.func @cnn_encoder_kernel(%arg0: i32, %arg1: i32, %arg2: memref<8x32xf32, #tpu.memory_space<vmem>>, %arg3: memref<32x32xbf16, #tpu.memory_space<vmem>>, %arg4: memref<1x32xf32, #tpu.memory_space<vmem>>, %arg5: memref<1x96x64xbf16, #tpu.memory_space<vmem>>, %arg6: memref<1x1x64xf32, #tpu.memory_space<vmem>>, %arg7: memref<32x32xbf16, #tpu.memory_space<vmem>>, %arg8: memref<1x32xf32, #tpu.memory_space<vmem>>, %arg9: memref<8x32xf32, #tpu.memory_space<vmem>>, %arg10: memref<8x32xf32, #tpu.memory_space<vmem>>, %arg11: memref<8x32xf32, #tpu.memory_space<vmem>>, %arg12: memref<2x8x32xbf16, #tpu.memory_space<vmem>>) attributes {dimension_semantics = [#tpu.dimension_semantics<parallel>, #tpu.dimension_semantics<arbitrary>], iteration_bounds = array<i64: 2, 2>, scalar_prefetch = 0 : i64, scratch_operands = 2 : i64, tpu.core_type = #tpu.core_type<tc>, window_params = [{transform_indices = @transform_0, window_bounds = array<i64: 8, 32>}, {pipeline_mode = #tpu.pipeline_mode<synchronous>, transform_indices = @transform_1, window_bounds = array<i64: 32, 32>}, {pipeline_mode = #tpu.pipeline_mode<synchronous>, transform_indices = @transform_2, window_bounds = array<i64: 1, 32>}, {transform_indices = @transform_3, window_bounds = array<i64: 1, 96, 64>}, {transform_indices = @transform_4, window_bounds = array<i64: 1, 1, 64>}, {pipeline_mode = #tpu.pipeline_mode<synchronous>, transform_indices = @transform_5, window_bounds = array<i64: 32, 32>}, {pipeline_mode = #tpu.pipeline_mode<synchronous>, transform_indices = @transform_6, window_bounds = array<i64: 1, 32>}, {transform_indices = @transform_7, window_bounds = array<i64: 8, 32>}, {transform_indices = @transform_8, window_bounds = array<i64: 8, 32>}]} {
    %c0_i32 = arith.constant 0 : i32
    %0 = arith.cmpi eq, %arg1, %c0_i32 : i32
    %1 = arith.extui %0 : i1 to i32
    %c0_i32_0 = arith.constant 0 : i32
    %2 = arith.cmpi ne, %1, %c0_i32_0 : i32
    scf.if %2 {
      %c0_20 = arith.constant 0 : index
      %c0_21 = arith.constant 0 : index
      %39 = vector.load %arg2[%c0_20, %c0_21] : memref<8x32xf32, #tpu.memory_space<vmem>>, vector<8x32xf32>
      %40 = arith.truncf %39 : vector<8x32xf32> to vector<8x32xbf16>
      %c0_22 = arith.constant 0 : index
      %c0_23 = arith.constant 0 : index
      %41 = vector.load %arg3[%c0_22, %c0_23] : memref<32x32xbf16, #tpu.memory_space<vmem>>, vector<32x32xbf16>
      %cst_24 = arith.constant dense<0.000000e+00> : vector<8x32xf32>
      %42 = tpu.matmul %40, %41, %cst_24 {dimension_numbers = #tpu.dot_dimension_numbers<[1], [0], [0], [1], [0, 0, 1, 1], [], []>} : vector<8x32xbf16>, vector<32x32xbf16>, vector<8x32xf32> -> vector<8x32xf32>
      %c0_25 = arith.constant 0 : index
      %c0_26 = arith.constant 0 : index
      %43 = vector.load %arg4[%c0_25, %c0_26] : memref<1x32xf32, #tpu.memory_space<vmem>>, vector<1x32xf32>
      %44 = vector.broadcast %43 : vector<1x32xf32> to vector<8x32xf32>
      %45 = arith.addf %42, %44 : vector<8x32xf32>
      %c0_27 = arith.constant 0 : index
      %c0_28 = arith.constant 0 : index
      %46 = vector.load %arg11[%c0_27, %c0_28] : memref<8x32xf32, #tpu.memory_space<vmem>>, vector<8x32xf32>
      tpu.vector_store %arg11[%c0_27, %c0_28], %45 {strides = array<i32>} : memref<8x32xf32, #tpu.memory_space<vmem>>, vector<8x32xf32>,
      %47 = tpu.iota {dimensions = array<i32: 1>} : vector<1x8x32xi32>
      %48 = vector.shape_cast %47 : vector<1x8x32xi32> to vector<8x32xi32>
      %c-1_i32 = arith.constant -1 : i32
      %49 = vector.broadcast %c-1_i32 : i32 to vector<8x32xi32>
      %50 = arith.addi %48, %49 : vector<8x32xi32>
      %c0_i32_29 = arith.constant 0 : i32
      %51 = vector.broadcast %c0_i32_29 : i32 to vector<8x32xi32>
      %52 = arith.cmpi sge, %50, %51 : vector<8x32xi32>
      %c-1_i32_30 = arith.constant -1 : i32
      %53 = vector.broadcast %c-1_i32_30 : i32 to vector<8x32xi32>
      %54 = arith.addi %48, %53 : vector<8x32xi32>
      %c8_i32 = arith.constant 8 : i32
      %55 = vector.broadcast %c8_i32 : i32 to vector<8x32xi32>
      %56 = arith.cmpi slt, %54, %55 : vector<8x32xi32>
      %57 = arith.andi %52, %56 : vector<8x32xi1>
      %58 = arith.extui %57 : vector<8x32xi1> to vector<8x32xi32>
      %59 = arith.sitofp %58 : vector<8x32xi32> to vector<8x32xf32>
      %60 = arith.truncf %59 : vector<8x32xf32> to vector<8x32xbf16>
      %c0_31 = arith.constant 0 : index
      %c0_32 = arith.constant 0 : index
      %c0_33 = arith.constant 0 : index
      %61 = vector.load %arg12[%c0_31, %c0_32, %c0_33] : memref<2x8x32xbf16, #tpu.memory_space<vmem>>, vector<1x8x32xbf16>
      %62 = vector.shape_cast %61 : vector<1x8x32xbf16> to vector<8x32xbf16>
      %63 = vector.shape_cast %60 : vector<8x32xbf16> to vector<1x8x32xbf16>
      tpu.vector_store %arg12[%c0_31, %c0_32, %c0_33], %63 {strides = array<i32>} : memref<2x8x32xbf16, #tpu.memory_space<vmem>>, vector<1x8x32xbf16>,
      %c1_i32_34 = arith.constant 1 : i32
      %64 = vector.broadcast %c1_i32_34 : i32 to vector<8x32xi32>
      %65 = arith.addi %48, %64 : vector<8x32xi32>
      %c0_i32_35 = arith.constant 0 : i32
      %66 = vector.broadcast %c0_i32_35 : i32 to vector<8x32xi32>
      %67 = arith.cmpi sge, %65, %66 : vector<8x32xi32>
      %c1_i32_36 = arith.constant 1 : i32
      %68 = vector.broadcast %c1_i32_36 : i32 to vector<8x32xi32>
      %69 = arith.addi %48, %68 : vector<8x32xi32>
      %c8_i32_37 = arith.constant 8 : i32
      %70 = vector.broadcast %c8_i32_37 : i32 to vector<8x32xi32>
      %71 = arith.cmpi slt, %69, %70 : vector<8x32xi32>
      %72 = arith.andi %67, %71 : vector<8x32xi1>
      %73 = arith.extui %72 : vector<8x32xi1> to vector<8x32xi32>
      %74 = arith.sitofp %73 : vector<8x32xi32> to vector<8x32xf32>
      %75 = arith.truncf %74 : vector<8x32xf32> to vector<8x32xbf16>
      %c1_38 = arith.constant 1 : index
      %c0_39 = arith.constant 0 : index
      %c0_40 = arith.constant 0 : index
      %76 = vector.load %arg12[%c1_38, %c0_39, %c0_40] : memref<2x8x32xbf16, #tpu.memory_space<vmem>>, vector<1x8x32xbf16>
      %77 = vector.shape_cast %76 : vector<1x8x32xbf16> to vector<8x32xbf16>
      %78 = vector.shape_cast %75 : vector<8x32xbf16> to vector<1x8x32xbf16>
      tpu.vector_store %arg12[%c1_38, %c0_39, %c0_40], %78 {strides = array<i32>} : memref<2x8x32xbf16, #tpu.memory_space<vmem>>, vector<1x8x32xbf16>,
    } else {
    }
    %c0 = arith.constant 0 : index
    %c0_1 = arith.constant 0 : index
    %3 = vector.load %arg11[%c0, %c0_1] : memref<8x32xf32, #tpu.memory_space<vmem>>, vector<8x32xf32>
    %4 = arith.truncf %3 : vector<8x32xf32> to vector<8x32xbf16>
    %c1_i32 = arith.constant 1 : i32
    %5 = tpu.dynamic_rotate %3 by %c1_i32 dim 0 : vector<8x32xf32>, i32 -> vector<8x32xf32>
    %6 = arith.truncf %5 : vector<8x32xf32> to vector<8x32xbf16>
    %c0_2 = arith.constant 0 : index
    %c0_3 = arith.constant 0 : index
    %c0_4 = arith.constant 0 : index
    %7 = vector.load %arg12[%c0_2, %c0_3, %c0_4] : memref<2x8x32xbf16, #tpu.memory_space<vmem>>, vector<1x8x32xbf16>
    %8 = vector.shape_cast %7 : vector<1x8x32xbf16> to vector<8x32xbf16>
    %9 = arith.mulf %6, %8 : vector<8x32xbf16>
    %c7_i32 = arith.constant 7 : i32
    %10 = tpu.dynamic_rotate %3 by %c7_i32 dim 0 : vector<8x32xf32>, i32 -> vector<8x32xf32>
    %11 = arith.truncf %10 : vector<8x32xf32> to vector<8x32xbf16>
    %c1 = arith.constant 1 : index
    %c0_5 = arith.constant 0 : index
    %c0_6 = arith.constant 0 : index
    %12 = vector.load %arg12[%c1, %c0_5, %c0_6] : memref<2x8x32xbf16, #tpu.memory_space<vmem>>, vector<1x8x32xbf16>
    %13 = vector.shape_cast %12 : vector<1x8x32xbf16> to vector<8x32xbf16>
    %14 = arith.mulf %11, %13 : vector<8x32xbf16>
    %15 = tpu.concatenate %9, %4, %14 in 1 : vector<8x32xbf16>, vector<8x32xbf16>, vector<8x32xbf16> -> vector<8x96xbf16>
    %c0_7 = arith.constant 0 : index
    %c0_8 = arith.constant 0 : index
    %c0_9 = arith.constant 0 : index
    %16 = vector.load %arg5[%c0_7, %c0_8, %c0_9] : memref<1x96x64xbf16, #tpu.memory_space<vmem>>, vector<1x96x64xbf16>
    %17 = vector.shape_cast %16 : vector<1x96x64xbf16> to vector<96x64xbf16>
    %cst = arith.constant dense<0.000000e+00> : vector<8x64xf32>
    %18 = tpu.matmul %15, %17, %cst {dimension_numbers = #tpu.dot_dimension_numbers<[1], [0], [0], [1], [0, 0, 1, 1], [], []>} : vector<8x96xbf16>, vector<96x64xbf16>, vector<8x64xf32> -> vector<8x64xf32>
    %c0_10 = arith.constant 0 : index
    %c0_11 = arith.constant 0 : index
    %c0_12 = arith.constant 0 : index
    %19 = vector.load %arg6[%c0_10, %c0_11, %c0_12] : memref<1x1x64xf32, #tpu.memory_space<vmem>>, vector<1x1x64xf32>
    %20 = vector.shape_cast %19 : vector<1x1x64xf32> to vector<1x64xf32>
    %21 = vector.broadcast %20 : vector<1x64xf32> to vector<8x64xf32>
    %22 = arith.addf %18, %21 : vector<8x64xf32>
    %23 = vector.extract_strided_slice %22 {offsets = [0, 32], sizes = [8, 32], strides = [1, 1]} : vector<8x64xf32> to vector<8x32xf32>
    %cst_13 = arith.constant 0.000000e+00 : f32
    %24 = vector.broadcast %cst_13 : f32 to vector<8x32xf32>
    %25 = arith.subf %24, %23 : vector<8x32xf32>
    %26 = math.exp %25 : vector<8x32xf32>
    %cst_14 = arith.constant 1.000000e+00 : f32
    %27 = vector.broadcast %cst_14 : f32 to vector<8x32xf32>
    %28 = arith.addf %27, %26 : vector<8x32xf32>
    %29 = tpu.reciprocal %28 {approx = true} : vector<8x32xf32> -> vector<8x32xf32>
    %30 = vector.extract_strided_slice %22 {offsets = [0, 0], sizes = [8, 32], strides = [1, 1]} : vector<8x64xf32> to vector<8x32xf32>
    %31 = arith.mulf %30, %29 : vector<8x32xf32>
    %32 = arith.addf %31, %3 : vector<8x32xf32>
    %cst_15 = arith.constant 0.707106769 : f32
    %33 = vector.broadcast %cst_15 : f32 to vector<8x32xf32>
    %34 = arith.mulf %32, %33 : vector<8x32xf32>
    %c0_16 = arith.constant 0 : index
    %c0_17 = arith.constant 0 : index
    %35 = vector.load %arg11[%c0_16, %c0_17] : memref<8x32xf32, #tpu.memory_space<vmem>>, vector<8x32xf32>
    tpu.vector_store %arg11[%c0_16, %c0_17], %34 {strides = array<i32>} : memref<8x32xf32, #tpu.memory_space<vmem>>, vector<8x32xf32>,
    %c1_i32_18 = arith.constant 1 : i32
    %36 = arith.cmpi eq, %arg1, %c1_i32_18 : i32
    %37 = arith.extui %36 : i1 to i32
    %c0_i32_19 = arith.constant 0 : i32
    %38 = arith.cmpi ne, %37, %c0_i32_19 : i32
    scf.if %38 {
      %39 = arith.truncf %34 : vector<8x32xf32> to vector<8x32xbf16>
      %c0_20 = arith.constant 0 : index
      %c0_21 = arith.constant 0 : index
      %40 = vector.load %arg7[%c0_20, %c0_21] : memref<32x32xbf16, #tpu.memory_space<vmem>>, vector<32x32xbf16>
      %cst_22 = arith.constant dense<0.000000e+00> : vector<8x32xf32>
      %41 = tpu.matmul %39, %40, %cst_22 {dimension_numbers = #tpu.dot_dimension_numbers<[1], [0], [0], [1], [0, 0, 1, 1], [], []>} : vector<8x32xbf16>, vector<32x32xbf16>, vector<8x32xf32> -> vector<8x32xf32>
      %c0_23 = arith.constant 0 : index
      %c0_24 = arith.constant 0 : index
      %42 = vector.load %arg8[%c0_23, %c0_24] : memref<1x32xf32, #tpu.memory_space<vmem>>, vector<1x32xf32>
      %43 = vector.broadcast %42 : vector<1x32xf32> to vector<8x32xf32>
      %44 = arith.addf %41, %43 : vector<8x32xf32>
      %c0_25 = arith.constant 0 : index
      %c0_26 = arith.constant 0 : index
      %45 = vector.load %arg9[%c0_25, %c0_26] : memref<8x32xf32, #tpu.memory_space<vmem>>, vector<8x32xf32>
      tpu.vector_store %arg9[%c0_25, %c0_26], %44 {strides = array<i32>} : memref<8x32xf32, #tpu.memory_space<vmem>>, vector<8x32xf32>,
      %c0_27 = arith.constant 0 : index
      %c0_28 = arith.constant 0 : index
      %46 = vector.load %arg2[%c0_27, %c0_28] : memref<8x32xf32, #tpu.memory_space<vmem>>, vector<8x32xf32>
      %47 = arith.addf %44, %46 : vector<8x32xf32>
      %cst_29 = arith.constant 0.707106769 : f32
      %48 = vector.broadcast %cst_29 : f32 to vector<8x32xf32>
      %49 = arith.mulf %47, %48 : vector<8x32xf32>
      %c0_30 = arith.constant 0 : index
      %c0_31 = arith.constant 0 : index
      %50 = vector.load %arg10[%c0_30, %c0_31] : memref<8x32xf32, #tpu.memory_space<vmem>>, vector<8x32xf32>
      tpu.vector_store %arg10[%c0_30, %c0_31], %49 {strides = array<i32>} : memref<8x32xf32, #tpu.memory_space<vmem>>, vector<8x32xf32>,
    } else {
    }
    return
  }
  func.func @transform_0(%arg0: i32, %arg1: i32) -> (i32, i32) {
    %c0_i32 = arith.constant 0 : i32
    %c0_i32_0 = arith.constant 0 : i32
    return %arg0, %c0_i32 : i32, i32
  }
  func.func @transform_1(%arg0: i32, %arg1: i32) -> (i32, i32) {
    %c0_i32 = arith.constant 0 : i32
    %c0_i32_0 = arith.constant 0 : i32
    %c0_i32_1 = arith.constant 0 : i32
    return %c0_i32, %c0_i32_0 : i32, i32
  }
  func.func @transform_2(%arg0: i32, %arg1: i32) -> (i32, i32) {
    %c0_i32 = arith.constant 0 : i32
    %c0_i32_0 = arith.constant 0 : i32
    %c0_i32_1 = arith.constant 0 : i32
    return %c0_i32, %c0_i32_0 : i32, i32
  }
  func.func @transform_3(%arg0: i32, %arg1: i32) -> (i32, i32, i32) {
    %c0_i32 = arith.constant 0 : i32
    %c0_i32_0 = arith.constant 0 : i32
    %c0_i32_1 = arith.constant 0 : i32
    return %arg1, %c0_i32, %c0_i32_0 : i32, i32, i32
  }
  func.func @transform_4(%arg0: i32, %arg1: i32) -> (i32, i32, i32) {
    %c0_i32 = arith.constant 0 : i32
    %c0_i32_0 = arith.constant 0 : i32
    %c0_i32_1 = arith.constant 0 : i32
    return %arg1, %c0_i32, %c0_i32_0 : i32, i32, i32
  }
  func.func @transform_5(%arg0: i32, %arg1: i32) -> (i32, i32) {
    %c0_i32 = arith.constant 0 : i32
    %c0_i32_0 = arith.constant 0 : i32
    %c0_i32_1 = arith.constant 0 : i32
    return %c0_i32, %c0_i32_0 : i32, i32
  }
  func.func @transform_6(%arg0: i32, %arg1: i32) -> (i32, i32) {
    %c0_i32 = arith.constant 0 : i32
    %c0_i32_0 = arith.constant 0 : i32
    %c0_i32_1 = arith.constant 0 : i32
    return %c0_i32, %c0_i32_0 : i32, i32
  }
  func.func @transform_7(%arg0: i32, %arg1: i32) -> (i32, i32) {
    %c0_i32 = arith.constant 0 : i32
    %c0_i32_0 = arith.constant 0 : i32
    return %arg0, %c0_i32 : i32, i32
  }
  func.func @transform_8(%arg0: i32, %arg1: i32) -> (i32, i32) {
    %c0_i32 = arith.constant 0 : i32
    %c0_i32_0 = arith.constant 0 : i32
    return %arg0, %c0_i32 : i32, i32
  }
}

</mosaic_0001>

<llo_original>
// kernel: tpu_custom_call.1
$region0: #{tpu_custom_call.1}
  #allocation0 [shape = 'u32[]', space=smem, size = 0x4, offset = 0x4, fixed_abs, tag = 'smem constant byte address 0x4 - core index']
  #allocation1 [shape = 'u32[72,128]{1,0:T(1,128)}', space=vmem, size = 0x9000, scoped, tag = 'internal scratch']
  #allocation2 [shape = 'f32[8,32]{1,0:T(8,128)}', space=vmem, size = 0x1000, scoped, tag = 'scratch operand']
  #allocation3 [shape = 'bf16[2,8,32]{2,1,0:T(8,128)(2,1)}', space=vmem, size = 0x1000, scoped, tag = 'scratch operand']
  %s0 = inlined_call_operand.vmem [shape: f32[16,32], index: 0, kind: input, shape index: {}]
  %s1 = inlined_call_operand.vmem [shape: bf16[32,32], index: 1, kind: input, shape index: {}]
  %s2 = inlined_call_operand.vmem [shape: f32[1,32], index: 2, kind: input, shape index: {}]
  %s3 = inlined_call_operand.vmem [shape: bf16[2,96,64], index: 3, kind: input, shape index: {}]
  %s4 = inlined_call_operand.vmem [shape: f32[2,1,64], index: 4, kind: input, shape index: {}]
  %s5 = inlined_call_operand.vmem [shape: bf16[32,32], index: 5, kind: input, shape index: {}]
  %s6 = inlined_call_operand.vmem [shape: f32[1,32], index: 6, kind: input, shape index: {}]
  %s7 = inlined_call_operand.hbm [shape: f32[16,32], index: 7, kind: output, shape index: {0}]
  %s8 = inlined_call_operand.hbm [shape: f32[16,32], index: 8, kind: output, shape index: {1}]
  %9 = xla_tuple %s7, %s8
  %s10 = sld [smem:[#allocation0]]
  $region77: #{tpu_custom_call.1} parent=0
    _
  %s12 = ssub.s32 1, %s10
  %s13 = scalar_select 0, %s12, %s10
  $region1: #{tpu_custom_call.1} parent=0
    #allocation4 [shape = 'u8[8192]{0}', space=vmem, size = 0x2000, scoped, tag = 'output window, operand 0']
    #allocation5 [shape = 's32[2]{0}', space=sflag, size = 0x8, scoped, tag = 'scoped memory for tpu_custom_call.1']
    #allocation6 [shape = 'u8[8192]{0}', space=vmem, size = 0x2000, scoped, tag = 'output window, operand 1']
    #allocation7 [shape = 's32[2]{0}', space=sflag, size = 0x8, scoped, tag = 'scoped memory for tpu_custom_call.1']
    %14 = vsyncpa [#allocation5], 0
    %s15 = scalar_lea.sflag [#allocation5], 1
    %16 = vsyncpa %s15, 0
    %17 = vsyncpa [#allocation7], 0
    %s18 = scalar_lea.sflag [#allocation7], 1
    %19 = vsyncpa %s18, 0
    loop: start=0, step=1, limit=6
    $region2: #{tpu_custom_call.1} parent=1 // loop_pre_header
      _
    $region3: #{tpu_custom_call.1} parent=1 // loop_header
      %s21 = sphi 0, %s25
      %p22 = scmp.ge.s32.totalorder %s21, 6
      %s28 = sphi 0, %s40
      %s29 = sphi 0, %s36
      %s30 = sphi 0, %s28
      %s31 = sphi 0, %s29
      %s32 = sphi 0, %s30
      %s33 = sphi 0, %s31
      %s43 = sphi 0, %s45
      %s46 = sphi 0, %s43
      %s47 = sphi 0, %s46
      %s63 = sphi 0, %s47
      %s67 = sphi 0, %s67
      %s69 = sphi 0, %s67
      %s70 = sphi 0, %s69
      %s84 = sphi 0, %s70
      %s88 = sphi 0, %s88
      %s90 = sphi 0, %s88
      %s91 = sphi 0, %s90
      %s105 = sphi 0, %s91
      %s111 = sphi 0, %s113
      %s114 = sphi 0, %s111
      %s115 = sphi 0, %s114
      %s131 = sphi 0, %s115
      %s137 = sphi 0, %s139
      %s140 = sphi 0, %s137
      %s141 = sphi 0, %s140
      %s157 = sphi 0, %s141
      %s161 = sphi 0, %s161
      %s163 = sphi 0, %s161
      %s164 = sphi 0, %s163
      %s178 = sphi 0, %s164
      %s182 = sphi 0, %s182
      %s184 = sphi 0, %s182
      %s185 = sphi 0, %s184
      %s199 = sphi 0, %s185
      %s205 = sphi 0, %s207
      %s208 = sphi 0, %s205
      %s209 = sphi 0, %s208
      %s225 = sphi 0, %s209
      %s231 = sphi 0, %s233
      %s234 = sphi 0, %s231
      %s235 = sphi 0, %s234
      %s251 = sphi 0, %s235
    $region4: #{tpu_custom_call.1} parent=1 // loop_header_branch
      %24 = sbr.rel (%p22) target = $region8
    $region5: #{tpu_custom_call.1} parent=1 // loop_body
      %s26 = ssub.s32 %s21, 1
      %s27 = ssub.s32 %s21, 2
      %s34 = sadd.s32 1, %s29
      %p35 = scmp.ge.s32.totalorder %s34, 2
      %s36 = scalar_select %p35, 0, %s34
      %s37 = sadd.s32 1, %s28
      %s38 = scalar_select %p35, %s37, %s28
      %p39 = scmp.ge.s32.totalorder %s38, 2
      %s40 = scalar_select %p39, 0, %s38
      %s41 = ssub.s32 %s28, %s40
      %p42 = scmp.eq.s32.totalorder %s41, 0
      %s44 = sadd.s32 %s43, 1
      %s45 = scalar_select %p42, %s43, %s44
      %p48 = pneg %p42
      %p49 = scmp.eq.s32.totalorder %s21, 3
      %p50 = por %p48, %p49
      %p51 = scmp.ne.s32.totalorder %s43, %s46
      %p52 = scmp.eq.s32.totalorder %s21, 0
      %p53 = por %p51, %p52
      %p54 = scmp.ne.s32.totalorder %s43, %s46
      %p55 = scmp.eq.s32.totalorder %s26, 3
      %p56 = por %p54, %p55
      %p57 = scmp.ne.s32.totalorder %s46, %s47
      %p58 = scmp.eq.s32.totalorder %s26, 0
      %p59 = por %p57, %p58
      %p60 = scmp.ne.s32.totalorder %s46, %s47
      %p61 = scmp.eq.s32.totalorder %s27, 3
      %p62 = por %p60, %p61
      %p64 = scmp.ne.s32.totalorder %s47, %s63
      %p65 = scmp.eq.s32.totalorder %s27, 0
      %p66 = por %p64, %p65
      %s68 = sadd.s32 %s67, 1
      %p71 = scmp.eq.s32.totalorder %s21, 3
      %p72 = scmp.ne.s32.totalorder %s67, %s69
      %p73 = scmp.eq.s32.totalorder %s21, 0
      %p74 = por %p72, %p73
      %p75 = scmp.ne.s32.totalorder %s67, %s69
      %p76 = scmp.eq.s32.totalorder %s26, 3
      %p77 = por %p75, %p76
      %p78 = scmp.ne.s32.totalorder %s69, %s70
      %p79 = scmp.eq.s32.totalorder %s26, 0
      %p80 = por %p78, %p79
      %p81 = scmp.ne.s32.totalorder %s69, %s70
      %p82 = scmp.eq.s32.totalorder %s27, 3
      %p83 = por %p81, %p82
      %p85 = scmp.ne.s32.totalorder %s70, %s84
      %p86 = scmp.eq.s32.totalorder %s27, 0
      %p87 = por %p85, %p86
      %s89 = sadd.s32 %s88, 1
      %p92 = scmp.eq.s32.totalorder %s21, 3
      %p93 = scmp.ne.s32.totalorder %s88, %s90
      %p94 = scmp.eq.s32.totalorder %s21, 0
      %p95 = por %p93, %p94
      %p96 = scmp.ne.s32.totalorder %s88, %s90
      %p97 = scmp.eq.s32.totalorder %s26, 3
      %p98 = por %p96, %p97
      %p99 = scmp.ne.s32.totalorder %s90, %s91
      %p100 = scmp.eq.s32.totalorder %s26, 0
      %p101 = por %p99, %p100
      %p102 = scmp.ne.s32.totalorder %s90, %s91
      %p103 = scmp.eq.s32.totalorder %s27, 3
      %p104 = por %p102, %p103
      %p106 = scmp.ne.s32.totalorder %s91, %s105
      %p107 = scmp.eq.s32.totalorder %s27, 0
      %p108 = por %p106, %p107
      %s109 = ssub.s32 %s29, %s36
      %p110 = scmp.eq.s32.totalorder %s109, 0
      %s112 = sadd.s32 %s111, 1
      %s113 = scalar_select %p110, %s111, %s112
      %p116 = pneg %p110
      %p117 = scmp.eq.s32.totalorder %s21, 3
      %p118 = por %p116, %p117
      %p119 = scmp.ne.s32.totalorder %s111, %s114
      %p120 = scmp.eq.s32.totalorder %s21, 0
      %p121 = por %p119, %p120
      %p122 = scmp.ne.s32.totalorder %s111, %s114
      %p123 = scmp.eq.s32.totalorder %s26, 3
      %p124 = por %p122, %p123
      %p125 = scmp.ne.s32.totalorder %s114, %s115
      %p126 = scmp.eq.s32.totalorder %s26, 0
      %p127 = por %p125, %p126
      %p128 = scmp.ne.s32.totalorder %s114, %s115
      %p129 = scmp.eq.s32.totalorder %s27, 3
      %p130 = por %p128, %p129
      %p132 = scmp.ne.s32.totalorder %s115, %s131
      %p133 = scmp.eq.s32.totalorder %s27, 0
      %p134 = por %p132, %p133
      %s135 = ssub.s32 %s29, %s36
      %p136 = scmp.eq.s32.totalorder %s135, 0
      %s138 = sadd.s32 %s137, 1
      %s139 = scalar_select %p136, %s137, %s138
      %p142 = pneg %p136
      %p143 = scmp.eq.s32.totalorder %s21, 3
      %p144 = por %p142, %p143
      %p145 = scmp.ne.s32.totalorder %s137, %s140
      %p146 = scmp.eq.s32.totalorder %s21, 0
      %p147 = por %p145, %p146
      %p148 = scmp.ne.s32.totalorder %s137, %s140
      %p149 = scmp.eq.s32.totalorder %s26, 3
      %p150 = por %p148, %p149
      %p151 = scmp.ne.s32.totalorder %s140, %s141
      %p152 = scmp.eq.s32.totalorder %s26, 0
      %p153 = por %p151, %p152
      %p154 = scmp.ne.s32.totalorder %s140, %s141
      %p155 = scmp.eq.s32.totalorder %s27, 3
      %p156 = por %p154, %p155
      %p158 = scmp.ne.s32.totalorder %s141, %s157
      %p159 = scmp.eq.s32.totalorder %s27, 0
      %p160 = por %p158, %p159
      %s162 = sadd.s32 %s161, 1
      %p165 = scmp.eq.s32.totalorder %s21, 3
      %p166 = scmp.ne.s32.totalorder %s161, %s163
      %p167 = scmp.eq.s32.totalorder %s21, 0
      %p168 = por %p166, %p167
      %p169 = scmp.ne.s32.totalorder %s161, %s163
      %p170 = scmp.eq.s32.totalorder %s26, 3
      %p171 = por %p169, %p170
      %p172 = scmp.ne.s32.totalorder %s163, %s164
      %p173 = scmp.eq.s32.totalorder %s26, 0
      %p174 = por %p172, %p173
      %p175 = scmp.ne.s32.totalorder %s163, %s164
      %p176 = scmp.eq.s32.totalorder %s27, 3
      %p177 = por %p175, %p176
      %p179 = scmp.ne.s32.totalorder %s164, %s178
      %p180 = scmp.eq.s32.totalorder %s27, 0
      %p181 = por %p179, %p180
      %s183 = sadd.s32 %s182, 1
      %p186 = scmp.eq.s32.totalorder %s21, 3
      %p187 = scmp.ne.s32.totalorder %s182, %s184
      %p188 = scmp.eq.s32.totalorder %s21, 0
      %p189 = por %p187, %p188
      %p190 = scmp.ne.s32.totalorder %s182, %s184
      %p191 = scmp.eq.s32.totalorder %s26, 3
      %p192 = por %p190, %p191
      %p193 = scmp.ne.s32.totalorder %s184, %s185
      %p194 = scmp.eq.s32.totalorder %s26, 0
      %p195 = por %p193, %p194
      %p196 = scmp.ne.s32.totalorder %s184, %s185
      %p197 = scmp.eq.s32.totalorder %s27, 3
      %p198 = por %p196, %p197
      %p200 = scmp.ne.s32.totalorder %s185, %s199
      %p201 = scmp.eq.s32.totalorder %s27, 0
      %p202 = por %p200, %p201
      %s203 = ssub.s32 %s28, %s40
      %p204 = scmp.eq.s32.totalorder %s203, 0
      %s206 = sadd.s32 %s205, 1
      %s207 = scalar_select %p204, %s205, %s206
      %p210 = pneg %p204
      %p211 = scmp.eq.s32.totalorder %s21, 3
      %p212 = por %p210, %p211
      %p213 = scmp.ne.s32.totalorder %s205, %s208
      %p214 = scmp.eq.s32.totalorder %s21, 0
      %p215 = por %p213, %p214
      %p216 = scmp.ne.s32.totalorder %s205, %s208
      %p217 = scmp.eq.s32.totalorder %s26, 3
      %p218 = por %p216, %p217
      %p219 = scmp.ne.s32.totalorder %s208, %s209
      %p220 = scmp.eq.s32.totalorder %s26, 0
      %p221 = por %p219, %p220
      %p222 = scmp.ne.s32.totalorder %s208, %s209
      %p223 = scmp.eq.s32.totalorder %s27, 3
      %p224 = por %p222, %p223
      %p226 = scmp.ne.s32.totalorder %s209, %s225
      %p227 = scmp.eq.s32.totalorder %s27, 0
      %p228 = por %p226, %p227
      %s229 = ssub.s32 %s28, %s40
      %p230 = scmp.eq.s32.totalorder %s229, 0
      %s232 = sadd.s32 %s231, 1
      %s233 = scalar_select %p230, %s231, %s232
      %p236 = pneg %p230
      %p237 = scmp.eq.s32.totalorder %s21, 3
      %p238 = por %p236, %p237
      %p239 = scmp.ne.s32.totalorder %s231, %s234
      %p240 = scmp.eq.s32.totalorder %s21, 0
      %p241 = por %p239, %p240
      %p242 = scmp.ne.s32.totalorder %s231, %s234
      %p243 = scmp.eq.s32.totalorder %s26, 3
      %p244 = por %p242, %p243
      %p245 = scmp.ne.s32.totalorder %s234, %s235
      %p246 = scmp.eq.s32.totalorder %s26, 0
      %p247 = por %p245, %p246
      %p248 = scmp.ne.s32.totalorder %s234, %s235
      %p249 = scmp.eq.s32.totalorder %s27, 3
      %p250 = por %p248, %p249
      %p252 = scmp.ne.s32.totalorder %s235, %s251
      %p253 = scmp.eq.s32.totalorder %s27, 0
      %p254 = por %p252, %p253
      %p255 = scmp.le.s32.totalorder 1, %s21
      %p256 = scmp.lt.s32.totalorder %s21, 5
      %p257 = pnand %p255, %p256
      %p258 = pneg %p257
      // Predicated region
      $region9: #{tpu_custom_call.1} parent=5 // pred_check
        _
      $region10: #{tpu_custom_call.1} parent=5 // pred_check_branch
        %260 = sbr.rel (%p257) target = $region12
      $region11: #{tpu_custom_call.1} parent=5 // pred_region
        %s261 = ssub.s32 %s21, 1
        // Predicated region
        $region13: #{tpu_custom_call.1} parent=11 // pred_check
          %p262 = pneg %p80
        $region14: #{tpu_custom_call.1} parent=11 // pred_check_branch
          %264 = sbr.rel (%p262) target = $region16
        $region15: #{tpu_custom_call.1} parent=11 // pred_region
          _
        $region16: #{tpu_custom_call.1} parent=11 // pred_fallthru
          _
        // Predicated region
        $region17: #{tpu_custom_call.1} parent=11 // pred_check
          %p265 = pneg %p101
        $region18: #{tpu_custom_call.1} parent=11 // pred_check_branch
          %267 = sbr.rel (%p265) target = $region20
        $region19: #{tpu_custom_call.1} parent=11 // pred_region
          _
        $region20: #{tpu_custom_call.1} parent=11 // pred_fallthru
          _
        // Predicated region
        $region21: #{tpu_custom_call.1} parent=11 // pred_check
          %p268 = pneg %p174
        $region22: #{tpu_custom_call.1} parent=11 // pred_check_branch
          %270 = sbr.rel (%p268) target = $region24
        $region23: #{tpu_custom_call.1} parent=11 // pred_region
          _
        $region24: #{tpu_custom_call.1} parent=11 // pred_fallthru
          _
        // Predicated region
        $region25: #{tpu_custom_call.1} parent=11 // pred_check
          %p271 = pneg %p195
        $region26: #{tpu_custom_call.1} parent=11 // pred_check_branch
          %273 = sbr.rel (%p271) target = $region28
        $region27: #{tpu_custom_call.1} parent=11 // pred_region
          _
        $region28: #{tpu_custom_call.1} parent=11 // pred_fallthru
          _
      $region12: #{tpu_custom_call.1} parent=5 // pred_fallthru
        _
      %p274 = scmp.lt.s32.totalorder %s21, 4
      // Predicated region
      $region29: #{tpu_custom_call.1} parent=5 // pred_check
        %p275 = pneg %p274
      $region30: #{tpu_custom_call.1} parent=5 // pred_check_branch
        %277 = sbr.rel (%p275) target = $region32
      $region31: #{tpu_custom_call.1} parent=5 // pred_region
        // Predicated region
        $region33: #{tpu_custom_call.1} parent=31 // pred_check
          %p278 = pneg %p53
        $region34: #{tpu_custom_call.1} parent=31 // pred_check_branch
          %280 = sbr.rel (%p278) target = $region36
        $region35: #{tpu_custom_call.1} parent=31 // pred_region
          %p281 = scmp.lt.s32.totalorder %s28, 1
          %s282 = scalar_select %p281, %s28, 1
          %s283 = smul.addr %s282, 8
          %s284 = scalar_lea.vmem %s0, %s283
        $region36: #{tpu_custom_call.1} parent=31 // pred_fallthru
          _
        // Predicated region
        $region37: #{tpu_custom_call.1} parent=31 // pred_check
          %p285 = pneg %p121
        $region38: #{tpu_custom_call.1} parent=31 // pred_check_branch
          %287 = sbr.rel (%p285) target = $region40
        $region39: #{tpu_custom_call.1} parent=31 // pred_region
          %p288 = scmp.lt.s32.totalorder %s29, 1
          %s289 = scalar_select %p288, %s29, 1
          %s290 = smul.addr %s289, 12
          %s291 = smul.addr %s290, 4
          %s292 = scalar_lea.vmem %s3, %s291
        $region40: #{tpu_custom_call.1} parent=31 // pred_fallthru
          _
        // Predicated region
        $region41: #{tpu_custom_call.1} parent=31 // pred_check
          %p293 = pneg %p147
        $region42: #{tpu_custom_call.1} parent=31 // pred_check_branch
          %295 = sbr.rel (%p293) target = $region44
        $region43: #{tpu_custom_call.1} parent=31 // pred_region
          %p296 = scmp.lt.s32.totalorder %s29, 1
          %s297 = scalar_select %p296, %s29, 1
          %s298 = scalar_lea.vmem %s4, %s297
        $region44: #{tpu_custom_call.1} parent=31 // pred_fallthru
          _
      $region32: #{tpu_custom_call.1} parent=5 // pred_fallthru
        _
      %p299 = scmp.le.s32.totalorder 1, %s21
      %p300 = scmp.lt.s32.totalorder %s21, 5
      %p301 = pnand %p299, %p300
      %p302 = pneg %p301
      // Predicated region
      $region45: #{tpu_custom_call.1} parent=5 // pred_check
        _
      $region46: #{tpu_custom_call.1} parent=5 // pred_check_branch
        %304 = sbr.rel (%p301) target = $region48
      $region47: #{tpu_custom_call.1} parent=5 // pred_region
        %s305 = ssub.s32 %s21, 1
        %p306 = scmp.lt.s32.totalorder %s30, 1
        %s307 = scalar_select %p306, %s30, 1
        %s308 = smul.addr %s307, 8
        %s309 = scalar_lea.vmem %s0, %s308
        %p310 = pneg %p59
        %p311 = pneg %p56
        %p312 = pneg %p80
        %p313 = pneg %p77
        %p314 = pneg %p101
        %p315 = pneg %p98
        %p316 = scmp.lt.s32.totalorder %s31, 1
        %s317 = scalar_select %p316, %s31, 1
        %s318 = smul.addr %s317, 12
        %s319 = smul.addr %s318, 4
        %s320 = scalar_lea.vmem %s3, %s319
        %p321 = pneg %p127
        %p322 = pneg %p124
        %p323 = scmp.lt.s32.totalorder %s31, 1
        %s324 = scalar_select %p323, %s31, 1
        %s325 = scalar_lea.vmem %s4, %s324
        %p326 = pneg %p153
        %p327 = pneg %p150
        %p328 = pneg %p174
        %p329 = pneg %p171
        %p330 = pneg %p195
        %p331 = pneg %p192
        %p332 = pneg %p221
        %p333 = pneg %p218
        %s334 = sand.u32 %s208, 1
        %s335 = scalar_lea.sflag [#allocation5], %s334
        %s336 = sand.u32 %s208, 1
        %s337 = smul.addr %s336, 8
        %s338 = scalar_lea.vmem [#allocation4], %s337
        %p339 = pneg %p247
        %p340 = pneg %p244
        %s341 = sand.u32 %s234, 1
        %s342 = scalar_lea.sflag [#allocation7], %s341
        %s343 = sand.u32 %s234, 1
        %s344 = smul.addr %s343, 8
        %s345 = scalar_lea.vmem [#allocation6], %s344
        %p346 = scmp.lt.s32.totalorder %s30, 1
        %s347 = scalar_select %p346, %s30, 1
        %s348 = smul.addr %s347, 8
        %s349 = scalar_lea.vmem %s0, %s348
        %p350 = scmp.lt.s32.totalorder %s31, 1
        %s351 = scalar_select %p350, %s31, 1
        %s352 = smul.addr %s351, 12
        %s353 = smul.addr %s352, 4
        %s354 = scalar_lea.vmem %s3, %s353
        %p355 = scmp.lt.s32.totalorder %s31, 1
        %s356 = scalar_select %p355, %s31, 1
        %s357 = scalar_lea.vmem %s4, %s356
        %p359 = scmp.eq.s32.totalorder %s31, 0
        // Predicated region
        $region49: #{tpu_custom_call.1} parent=47 // pred_check
          %p360 = pneg %p359
        $region50: #{tpu_custom_call.1} parent=47 // pred_check_branch
          %362 = sbr.rel (%p360) target = $region52
        $region51: #{tpu_custom_call.1} parent=47 // pred_region
          %v363 = vld [vmem:[%s349] sm:$0xff]
          %v364 = vpack.c.bf16 %v363, %v363
          %v365 = vld [vmem:[%s1] sm:$0xf]
          %v366 = vld [vmem:[%s1 + $0x4] sm:$0xf]
          %v367 = vld [vmem:[%s1 + $0x8] sm:$0xf]
          %v368 = vld [vmem:[%s1 + $0xc] sm:$0xf]
          %v369 = vld [vmem:[%s2] sm:$0x1]
          %v371 = vperm.slane %v369, 0
          %v377 = vunpack.c.l.b16 %v365
          %v378 = vunpack.c.l.b16 %v366
          %v379 = vunpack.c.l.b16 %v367
          %v380 = vunpack.c.l.b16 %v368
          %v381 = vpack.c.b16 %v378, %v377
          %v382 = vpack.c.b16 %v380, %v379
          %vm385 = vcmask 261120
          %v387 = vsel %vm385, %v364, 0
          %389 = vmatpush.bf16.msra.mxu0 0
          %390 = vmatpush.bf16.msra.mxu0 0
          %391 = vmatpush.bf16.msra.mxu0 0
          %392 = vmatpush.bf16.msra.mxu0 0
          %393 = vmatpush.bf16.msra.mxu0 0
          %394 = vmatpush.bf16.msra.mxu0 0
          %395 = vmatpush.bf16.msra.mxu0 %v382
          %396 = vmatpush.bf16.msra.mxu0 %v381
          %397 = vmatmul.bf16.gmra.mxu0 %v387
          %v398 = vpop.f32.mrf.mxu0
          %v399 = vadd.f32 %v371, %v398
          %v400 = vpop.f32.mrf.mxu0
          %401 = vdwg.mxu0
          %402 = vst.msk [vmem:[#allocation2] sm:$0xff] %vm385, %v399
          %v403 = vlaneseq
          %v404 = vshrl.u32 %v403, 7
          %v405 = vadd.s32 %v404, 4294967295
          %vm406 = vcmp.ge.s32.totalorder %v405, 0
          %vm407 = vcmp.lt.s32.totalorder %v405, 8
          %vm408 = vmand %vm406, %vm407
          %v409 = vsel %vm408, 1, 0
          %v410 = vcvt.s32.f32 %v409
          %v411 = vpack.c.bf16 %v410, %v410
          %vm412 = vcmask 257024
          %413 = vst.msk [vmem:[#allocation3] sm:$0xf] %vm412, %v411
          %v414 = vadd.s32 %v404, 1
          %vm415 = vcmp.ge.s32.totalorder %v414, 0
          %vm416 = vcmp.lt.s32.totalorder %v414, 8
          %vm417 = vmand %vm415, %vm416
          %v418 = vsel %vm417, 1, 0
          %v419 = vcvt.s32.f32 %v418
          %v420 = vpack.c.bf16 %v419, %v419
          %s421 = scalar_lea.vmem [#allocation3], 4
          %422 = vst.msk [vmem:[%s421] sm:$0xf] %vm412, %v420
        $region52: #{tpu_custom_call.1} parent=47 // pred_fallthru
          _
        %v423 = vld [vmem:[#allocation2] sm:$0xff]
        %v424 = vpack.c.bf16 %v423, %v423
        %v425 = vrot.slane %v423, 7
        %v426 = vpack.c.bf16 %v425, %v425
        %v427 = vld [vmem:[#allocation3] sm:$0xf]
        %v428 = vunpack.c.l.bf16 %v426
        %v429 = vunpack.c.l.bf16 %v427
        %v430 = vmul.f32 %v428, %v429
        %v431 = vpack.c.bf16 %v430, %v430
        %v432 = vrot.slane %v423, 1
        %v433 = vpack.c.bf16 %v432, %v432
        %s434 = scalar_lea.vmem [#allocation3], 4
        %v435 = vld [vmem:[%s434] sm:$0xf]
        %v436 = vunpack.c.l.bf16 %v433
        %v437 = vunpack.c.l.bf16 %v435
        %v438 = vmul.f32 %v436, %v437
        %v439 = vpack.c.bf16 %v438, %v438
        %v441 = vunpack.c.l.b16 %v424
        %v442 = vpack.c.b16 %v441, %v441
        %443 = vrot.lane.b32.xlu0 %v442, 32
        %v444 = vpop.permute.xlu0 %443
        %v446 = vunpack.c.l.b16 %v439
        %v447 = vpack.c.b16 %v446, %v446
        %448 = vrot.lane.b32.xlu0 %v447, 64
        %v449 = vpop.permute.xlu0 %448
        %vm450 = vcmask 261120
        %v453 = vsel %vm450, %v431, %v444
        %vm454 = vcmask 523264
        %v456 = vsel %vm454, %v453, %v449
        %v457 = vld [vmem:[%s354] sm:$0xf]
        %v458 = vld [vmem:[%s354 + $0x4] sm:$0xf]
        %v459 = vld [vmem:[%s354 + $0x8] sm:$0xf]
        %v460 = vld [vmem:[%s354 + $0xc] sm:$0xf]
        %v461 = vld [vmem:[%s354 + $0x10] sm:$0xf]
        %v462 = vld [vmem:[%s354 + $0x14] sm:$0xf]
        %v463 = vld [vmem:[%s354 + $0x18] sm:$0xf]
        %v464 = vld [vmem:[%s354 + $0x1c] sm:$0xf]
        %v465 = vld [vmem:[%s354 + $0x20] sm:$0xf]
        %v466 = vld [vmem:[%s354 + $0x24] sm:$0xf]
        %v467 = vld [vmem:[%s354 + $0x28] sm:$0xf]
        %v468 = vld [vmem:[%s354 + $0x2c] sm:$0xf]
        %v469 = vld [vmem:[%s357] sm:$0x1]
        %v471 = vperm.slane %v469, 0
        %v485 = vunpack.c.l.b16 %v457
        %v486 = vunpack.c.l.b16 %v458
        %v487 = vunpack.c.l.b16 %v459
        %v488 = vunpack.c.l.b16 %v460
        %v489 = vunpack.c.l.b16 %v461
        %v490 = vunpack.c.l.b16 %v462
        %v491 = vunpack.c.l.b16 %v463
        %v492 = vunpack.c.l.b16 %v464
        %v493 = vunpack.c.l.b16 %v465
        %v494 = vunpack.c.l.b16 %v466
        %v495 = vunpack.c.l.b16 %v467
        %v496 = vunpack.c.l.b16 %v468
        %v497 = vpack.c.b16 %v486, %v485
        %v498 = vpack.c.b16 %v488, %v487
        %v499 = vpack.c.b16 %v490, %v489
        %v500 = vpack.c.b16 %v492, %v491
        %v501 = vpack.c.b16 %v494, %v493
        %v502 = vpack.c.b16 %v496, %v495
        %vm509 = vcmask 785408
        %v510 = vsel %vm509, %v456, 0
        %512 = vmatpush.bf16.msra.mxu0 0
        %513 = vmatpush.bf16.msra.mxu0 0
        %514 = vmatpush.bf16.msra.mxu0 %v502
        %515 = vmatpush.bf16.msra.mxu0 %v501
        %516 = vmatpush.bf16.msra.mxu0 %v500
        %517 = vmatpush.bf16.msra.mxu0 %v499
        %518 = vmatpush.bf16.msra.mxu0 %v498
        %519 = vmatpush.bf16.msra.mxu0 %v497
        %520 = vmatmul.bf16.gmra.mxu0 %v510
        %v521 = vpop.f32.mrf.mxu0
        %v522 = vadd.f32 %v471, %v521
        %v523 = vpop.f32.mrf.mxu0
        %524 = vdwg.mxu0
        %v525 = vsub.f32 0.0, %v522
        %v526 = vmul.f32 %v525, 1.442695
        %v527 = vpow.pop %v526
        %v528 = vadd.f32 %v527, 1.0
        %v529 = vrcp.pop %v528
        %531 = vrot.lane.b32.xlu0 %v529, 96
        %v532 = vpop.permute.xlu0 %531
        %v534 = vmul.f32 %v522, %v532
        %v535 = vadd.f32 %v534, %v423
        %v536 = vmul.f32 %v535, 0.70710677
        %537 = vst.msk [vmem:[#allocation2] sm:$0xff] %vm450, %v536
        %p538 = scmp.eq.s32.totalorder %s31, 1
        // Predicated region
        $region53: #{tpu_custom_call.1} parent=47 // pred_check
          %p539 = pneg %p538
        $region54: #{tpu_custom_call.1} parent=47 // pred_check_branch
          %541 = sbr.rel (%p539) target = $region56
        $region55: #{tpu_custom_call.1} parent=47 // pred_region
          %v542 = vpack.c.bf16 %v536, %v536
          %v543 = vld [vmem:[%s5] sm:$0xf]
          %v544 = vld [vmem:[%s5 + $0x4] sm:$0xf]
          %v545 = vld [vmem:[%s5 + $0x8] sm:$0xf]
          %v546 = vld [vmem:[%s5 + $0xc] sm:$0xf]
          %v547 = vld [vmem:[%s6] sm:$0x1]
          %v549 = vperm.slane %v547, 0
          %v555 = vunpack.c.l.b16 %v543
          %v556 = vunpack.c.l.b16 %v544
          %v557 = vunpack.c.l.b16 %v545
          %v558 = vunpack.c.l.b16 %v546
          %v559 = vpack.c.b16 %v556, %v555
          %v560 = vpack.c.b16 %v558, %v557
          %v564 = vsel %vm450, %v542, 0
          %566 = vmatpush.bf16.msra.mxu0 0
          %567 = vmatpush.bf16.msra.mxu0 0
          %568 = vmatpush.bf16.msra.mxu0 0
          %569 = vmatpush.bf16.msra.mxu0 0
          %570 = vmatpush.bf16.msra.mxu0 0
          %571 = vmatpush.bf16.msra.mxu0 0
          %572 = vmatpush.bf16.msra.mxu0 %v560
          %573 = vmatpush.bf16.msra.mxu0 %v559
          %574 = vmatmul.bf16.gmra.mxu0 %v564
          %v575 = vpop.f32.mrf.mxu0
          %v576 = vadd.f32 %v549, %v575
          %v577 = vpop.f32.mrf.mxu0
          %578 = vdwg.mxu0
          %579 = vst.msk [vmem:[%s338] sm:$0xff] %vm450, %v576
          %v580 = vld [vmem:[%s349] sm:$0xff]
          %v581 = vadd.f32 %v576, %v580
          %v582 = vmul.f32 %v581, 0.70710677
          %583 = vst.msk [vmem:[%s345] sm:$0xff] %vm450, %v582
        $region56: #{tpu_custom_call.1} parent=47 // pred_fallthru
          _
        %s584 = sand.u32 %s208, 1
        %s585 = scalar_lea.sflag [#allocation5], %s584
        %s586 = sand.u32 %s208, 1
        %s587 = smul.addr %s586, 8
        %s588 = scalar_lea.vmem [#allocation4], %s587
        %s589 = sand.u32 %s234, 1
        %s590 = scalar_lea.sflag [#allocation7], %s589
        %s591 = sand.u32 %s234, 1
        %s592 = smul.addr %s591, 8
        %s593 = scalar_lea.vmem [#allocation6], %s592
        // Predicated region
        $region57: #{tpu_custom_call.1} parent=47 // pred_check
          %p594 = pneg %p218
        $region58: #{tpu_custom_call.1} parent=47 // pred_check_branch
          %596 = sbr.rel (%p594) target = $region60
        $region59: #{tpu_custom_call.1} parent=47 // pred_region
          %598 = vsyncadd %s585, 0
          %s599 = smul.addr %s30, 8
          %s600 = scalar_lea.hbm %s7, %s599
          %s602 = sshll.u32 %s588, 4
          %s603 = int_to_ptr.vmem [resolvable:$true] %s602
          %s604 = sshll.u32 %s600, 4
          %s605 = int_to_ptr.hbm [resolvable:$true] %s604
          %607 = dma.vmem_to_hbm [thread:$0]  %s603, 128, %s605, %s585
        $region60: #{tpu_custom_call.1} parent=47 // pred_fallthru
          _
        // Predicated region
        $region61: #{tpu_custom_call.1} parent=47 // pred_check
          %p608 = pneg %p244
        $region62: #{tpu_custom_call.1} parent=47 // pred_check_branch
          %610 = sbr.rel (%p608) target = $region64
        $region63: #{tpu_custom_call.1} parent=47 // pred_region
          %612 = vsyncadd %s590, 0
          %s613 = smul.addr %s30, 8
          %s614 = scalar_lea.hbm %s8, %s613
          %s616 = sshll.u32 %s593, 4
          %s617 = int_to_ptr.vmem [resolvable:$true] %s616
          %s618 = sshll.u32 %s614, 4
          %s619 = int_to_ptr.hbm [resolvable:$true] %s618
          %621 = dma.vmem_to_hbm [thread:$0]  %s617, 128, %s619, %s590
        $region64: #{tpu_custom_call.1} parent=47 // pred_fallthru
          _
      $region48: #{tpu_custom_call.1} parent=5 // pred_fallthru
        _
      %p622 = scmp.le.s32.totalorder 2, %s21
      // Predicated region
      $region65: #{tpu_custom_call.1} parent=5 // pred_check
        %p623 = pneg %p622
      $region66: #{tpu_custom_call.1} parent=5 // pred_check_branch
        %625 = sbr.rel (%p623) target = $region68
      $region67: #{tpu_custom_call.1} parent=5 // pred_region
        %s626 = ssub.s32 %s21, 2
        // Predicated region
        $region69: #{tpu_custom_call.1} parent=67 // pred_check
          %p627 = pneg %p224
        $region70: #{tpu_custom_call.1} parent=67 // pred_check_branch
          %629 = sbr.rel (%p627) target = $region72
        $region71: #{tpu_custom_call.1} parent=67 // pred_region
          %s630 = sand.u32 %s209, 1
          %s631 = scalar_lea.sflag [#allocation5], %s630
          %s632 = sand.u32 %s209, 1
          %s633 = smul.addr %s632, 8
          %s634 = scalar_lea.vmem [#allocation4], %s633
          %636 = dma.done %s631, 128
        $region72: #{tpu_custom_call.1} parent=67 // pred_fallthru
          _
        // Predicated region
        $region73: #{tpu_custom_call.1} parent=67 // pred_check
          %p637 = pneg %p250
        $region74: #{tpu_custom_call.1} parent=67 // pred_check_branch
          %639 = sbr.rel (%p637) target = $region76
        $region75: #{tpu_custom_call.1} parent=67 // pred_region
          %s640 = sand.u32 %s235, 1
          %s641 = scalar_lea.sflag [#allocation7], %s640
          %s642 = sand.u32 %s235, 1
          %s643 = smul.addr %s642, 8
          %s644 = scalar_lea.vmem [#allocation6], %s643
          %646 = dma.done %s641, 128
        $region76: #{tpu_custom_call.1} parent=67 // pred_fallthru
          _
      $region68: #{tpu_custom_call.1} parent=5 // pred_fallthru
        _
    $region6: #{tpu_custom_call.1} parent=1 // loop_footer
      %s25 = sadd.s32 1, %s21
    $region7: #{tpu_custom_call.1} parent=1 // loop_footer_branch
      %20 = sbr.rel target = $region3
    $region8: #{tpu_custom_call.1} parent=1 // loop_exit
      _
    %647 = vsyncpa [#allocation5], 1
    %s648 = scalar_lea.sflag [#allocation5], 1
    %649 = vsyncpa %s648, 1
    %650 = vsyncpa [#allocation7], 1
    %s651 = scalar_lea.sflag [#allocation7], 1
    %652 = vsyncpa %s651, 1

</llo_original>
